<compile_context>
chip_gen: v7x
topology: tpu7x:2x2x1
jax: 0.10.0
libtpu: 0.0.40
codegen_flags: <defaults>
</compile_context>

<pallas_src>
import math

import jax
import jax.numpy as jnp
from jax.experimental import pallas as pl
from jax.experimental.pallas import tpu as pltpu

_SUB = 8                 # f32 sublane count
_LANE = 128              # lane count
_CHUNK = _SUB * _LANE    # 1024 elements per (8, 128) chunk


def _cdiv(a, b):
    return -(-a // b)


# ---------------------------------------------------------------------------
# Pallas kernels.
#   Per block of shape (C, 8, 128) they compute elementwise
#       w = exp(-logvar) * (y_hat - y_true)^2 + logvar      (or plain (y_hat-y_true)^2)
#   and write the per-block partial sums reduced over the leading chunk axis as a
#   lane-dense (1, 8, 128) tile.  Padding elements are all-zero and contribute
#   exp(0)*0 + 0 = 0, so they do not affect the result.
# ---------------------------------------------------------------------------
def _wsq_sum_kernel(yh_ref, yt_ref, lv_ref, out_ref):
    yh = yh_ref[...].astype(jnp.float32)            # (C, 8, 128)
    yt = yt_ref[...].astype(jnp.float32)
    lv = lv_ref[...].astype(jnp.float32)
    err = yh - yt
    w = jnp.exp(-lv) * (err * err) + lv             # exp on EUP, rest on VPU
    out_ref[...] = jnp.sum(w, axis=0, keepdims=True)   # (1, 8, 128) partial sums


def _sq_sum_kernel(yh_ref, yt_ref, out_ref):
    err = yh_ref[...].astype(jnp.float32) - yt_ref[...].astype(jnp.float32)
    out_ref[...] = jnp.sum(err * err, axis=0, keepdims=True)


def _cat_pad_chunks(pieces, n_chunks, dtype):
    """Flatten pieces + zero tail into a single (n_chunks, 8, 128) array (one concat)."""
    flat = [jnp.asarray(p).reshape(-1).astype(dtype) for p in pieces]
    n = sum(x.shape[0] for x in flat)
    pad = n_chunks * _CHUNK - n
    if pad:
        flat.append(jnp.zeros((pad,), dtype))
    return jnp.concatenate(flat).reshape(n_chunks, _SUB, _LANE)


def pallas_weighted_sq_sum(yhat_pieces, ytrue_pieces, logvar_pieces=None,
                           *, max_block_chunks=512):
    """Sum over all elements of exp(-logvar)*(y_hat-y_true)^2 + logvar.

    `*_pieces` are lists of arrays (flattened & concatenated internally).  When
    `logvar_pieces is None` the plain-MSE kernel is used (no logvar HBM traffic).
    Returns a scalar f32.
    """
    n = sum(math.prod(p.shape) for p in yhat_pieces)
    total_chunks = max(1, _cdiv(n, _CHUNK))

    # Balanced blocking: big lane-dense blocks, but >= 2 grid steps when there is
    # enough data so both v7x TensorCores can take blocks ("parallel" semantics).
    g = _cdiv(total_chunks, max_block_chunks)
    if total_chunks > 1:
        g = max(g, 2)
    cpb = _cdiv(total_chunks, g)        # chunks per block
    padded_chunks = g * cpb

    yh_dtype = jnp.result_type(*yhat_pieces)
    yt_dtype = jnp.result_type(*ytrue_pieces)
    args = [_cat_pad_chunks(yhat_pieces, padded_chunks, yh_dtype),
            _cat_pad_chunks(ytrue_pieces, padded_chunks, yt_dtype)]
    if logvar_pieces is not None:
        lv_dtype = jnp.result_type(*logvar_pieces)
        args.append(_cat_pad_chunks(logvar_pieces, padded_chunks, lv_dtype))
        kernel = _wsq_sum_kernel
    else:
        kernel = _sq_sum_kernel

    in_spec = pl.BlockSpec((cpb, _SUB, _LANE), lambda i: (i, 0, 0))
    # Double-buffered inputs + double-buffered (1,8,128) output; keep well under the
    # v7x 64 MiB physical VMEM; raise the scoped limit (v5e default ~16 MiB).
    vmem_need = sum(2 * cpb * _CHUNK * a.dtype.itemsize for a in args) + 2 * _CHUNK * 4
    partials = pl.pallas_call(
        kernel,
        out_shape=jax.ShapeDtypeStruct((g, _SUB, _LANE), jnp.float32),
        grid=(g,),
        in_specs=[in_spec] * len(args),
        out_specs=pl.BlockSpec((1, _SUB, _LANE), lambda i: (i, 0, 0)),
        compiler_params=pltpu.CompilerParams(
            dimension_semantics=("parallel",),
            vmem_limit_bytes=int(max(32 << 20, vmem_need + (4 << 20)))),
    )(*args)
    return jnp.sum(partials)


# ---------------------------------------------------------------------------
# CoordLoss forward (glue).  Matches the PyTorch module for:
#   cfg.function == 'MSE', robust_weighing=False, velo_coeff=0, velo_warp=0,
#   outputs_obs is None, logvar last-dim in {1, 3} (or absent).
# compute_loss = mean_t(sum_d(exp(-lv)*(y_hat-y_true)^2 + lv)) = sum_all(.) / Tu,
# so samples are grouped by Tu and each group needs a single kernel call.
# TODO(synk): Huber loss, robust softmax weights (logvar last-dim==2 path),
#             velocity / warp losses and observed-branch (outputs_obs) losses
#             are not implemented in the kernel (not exercised by this config).
# ---------------------------------------------------------------------------
class CoordLossPallas:
    def __init__(self, scale=1.0):
        self.scale = float(scale)

    def forward(self, outputs, nframes, trajectories):
        outputs_unobs, outputs_obs = outputs
        assert outputs_obs is None  # observed branch not exercised here

        groups = {}   # Tu -> {"yh": [...], "yt": [...], "lv": [...], "has_unct": bool}
        cnt = 0
        for b, ratio_preds in enumerate(outputs_unobs):
            num_full = int(nframes[b])
            traj_gt = trajectories[b]
            for r, preds in ratio_preds.items():
                num_obs = int(math.floor(num_full * float(r)))
                traj = preds["traj"]                          # (Tu, out_dim)
                tu, out_dim = traj.shape
                gts = traj_gt[num_obs:num_full, :out_dim]     # (Tu, out_dim)
                grp = groups.setdefault(
                    tu, {"yh": [], "yt": [], "lv": [], "has_unct": False})
                grp["yh"].append(traj)
                grp["yt"].append(gts)
                if "unct" in preds:
                    # TODO(synk): a narrow logvar (e.g. (Tu,1)) could stay un-broadcast
                    # with a specialised kernel; broadcast here for generality.
                    grp["lv"].append(jnp.broadcast_to(preds["unct"], traj.shape))
                    grp["has_unct"] = True
                else:
                    grp["lv"].append(None)
                cnt += 1

        unobs_avg_loss = jnp.float32(0.0)
        for tu, grp in groups.items():
            if grp["has_unct"]:
                lv_pieces = [jnp.zeros(yh.shape, jnp.float32) if lv is None else lv
                             for yh, lv in zip(grp["yh"], grp["lv"])]
            else:
                lv_pieces = None   # zero logvar == plain MSE: skip the redundant input
            group_sum = pallas_weighted_sq_sum(grp["yh"], grp["yt"], lv_pieces)
            unobs_avg_loss = unobs_avg_loss + group_sum / float(tu)
        unobs_avg_loss = unobs_avg_loss / cnt

        total_loss = unobs_avg_loss
        loss_out = {"total_loss": total_loss, "unobs_loss": unobs_avg_loss}
        for k, v in loss_out.items():
            loss_out[k] = v * self.scale
        return loss_out


if __name__ == "__main__":
    key = jax.random.PRNGKey(0)
    B, T, D = 2, 8, 3
    ratio = 0.5
    Tu = T - int(math.floor(T * ratio))   # 4 unobserved frames per sample

    k1, k2, k3, k4, k5 = jax.random.split(key, 5)
    trajectories = jax.random.normal(k1, (B, T, D), dtype=jnp.float32)
    nframes = jnp.full((B,), T, dtype=jnp.int32)

    # Synthetic model outputs: one observation ratio per sample, with traj + unct.
    preds_traj = jax.random.normal(k2, (B, Tu, D), dtype=jnp.float32)
    preds_unct = 0.1 * jax.random.normal(k3, (B, Tu, D), dtype=jnp.float32)
    outputs_unobs = [
        {ratio: {"traj": preds_traj[b], "unct": preds_unct[b]}} for b in range(B)
    ]
    outputs = (outputs_unobs, None)

    loss_mod = CoordLossPallas(scale=2.0)
    loss_out = loss_mod.forward(outputs, nframes, trajectories)
    total = jax.block_until_ready(loss_out["total_loss"])

    # Reference check (exercised path): per-sample mean_t(sum_d(exp(-lv)*mse + lv)).
    ref_losses = []
    for b in range(B):
        num_obs = int(math.floor(T * ratio))
        gts = trajectories[b, num_obs:T, :D]
        mse = (preds_traj[b] - gts) ** 2
        ref_losses.append(
            jnp.mean(jnp.sum(jnp.exp(-preds_unct[b]) * mse + preds_unct[b], axis=-1)))
    ref_total = 2.0 * (sum(ref_losses) / len(ref_losses))
    assert jnp.allclose(total, ref_total, rtol=1e-4, atol=1e-5), (total, ref_total)

    # Second check: plain-MSE kernel path (no logvar input) with a multi-block grid.
    yh2 = jax.random.normal(k4, (2, 256, 3), dtype=jnp.float32)
    yt2 = jax.random.normal(k5, (2, 256, 3), dtype=jnp.float32)
    got = jax.block_until_ready(pallas_weighted_sq_sum([yh2], [yt2], None))
    ref = jnp.sum((yh2 - yt2) ** 2)
    assert jnp.allclose(got, ref, rtol=2e-4, atol=1e-3), (got, ref)

    print("KERNEL_OK")
</pallas_src>

<mosaic_0001>
module attributes {stable_mosaic.version = 11 : i64} {
  func.func @_wsq_sum_kernel(%arg0: i32, %arg1: memref<1x8x128xf32, #tpu.memory_space<vmem>>, %arg2: memref<1x8x128xf32, #tpu.memory_space<vmem>>, %arg3: memref<1x8x128xf32, #tpu.memory_space<vmem>>, %arg4: memref<1x8x128xf32, #tpu.memory_space<vmem>>) attributes {dimension_semantics = [#tpu.dimension_semantics<parallel>], iteration_bounds = array<i64: 1>, scalar_prefetch = 0 : i64, scratch_operands = 0 : i64, tpu.core_type = #tpu.core_type<tc>, window_params = [{transform_indices = @transform_0, window_bounds = array<i64: 1, 8, 128>}, {transform_indices = @transform_1, window_bounds = array<i64: 1, 8, 128>}, {transform_indices = @transform_2, window_bounds = array<i64: 1, 8, 128>}, {transform_indices = @transform_3, window_bounds = array<i64: 1, 8, 128>}]} {
    %c0 = arith.constant 0 : index
    %c0_0 = arith.constant 0 : index
    %c0_1 = arith.constant 0 : index
    %0 = vector.load %arg1[%c0, %c0_0, %c0_1] : memref<1x8x128xf32, #tpu.memory_space<vmem>>, vector<1x8x128xf32>
    %c0_2 = arith.constant 0 : index
    %c0_3 = arith.constant 0 : index
    %c0_4 = arith.constant 0 : index
    %1 = vector.load %arg2[%c0_2, %c0_3, %c0_4] : memref<1x8x128xf32, #tpu.memory_space<vmem>>, vector<1x8x128xf32>
    %c0_5 = arith.constant 0 : index
    %c0_6 = arith.constant 0 : index
    %c0_7 = arith.constant 0 : index
    %2 = vector.load %arg3[%c0_5, %c0_6, %c0_7] : memref<1x8x128xf32, #tpu.memory_space<vmem>>, vector<1x8x128xf32>
    %3 = arith.subf %0, %1 : vector<1x8x128xf32>
    %cst = arith.constant 0.000000e+00 : f32
    %4 = vector.broadcast %cst : f32 to vector<1x8x128xf32>
    %5 = arith.subf %4, %2 : vector<1x8x128xf32>
    %6 = math.exp %5 : vector<1x8x128xf32>
    %7 = arith.mulf %3, %3 : vector<1x8x128xf32>
    %8 = arith.mulf %6, %7 : vector<1x8x128xf32>
    %9 = arith.addf %8, %2 : vector<1x8x128xf32>
    %cst_8 = arith.constant dense<0.000000e+00> : vector<8x128xf32>
    %10 = vector.multi_reduction <add>, %9, %cst_8 [0] : vector<1x8x128xf32> to vector<8x128xf32>
    %11 = vector.shape_cast %10 : vector<8x128xf32> to vector<1x8x128xf32>
    %c0_9 = arith.constant 0 : index
    %c0_10 = arith.constant 0 : index
    %c0_11 = arith.constant 0 : index
    %12 = vector.load %arg4[%c0_9, %c0_10, %c0_11] : memref<1x8x128xf32, #tpu.memory_space<vmem>>, vector<1x8x128xf32>
    tpu.vector_store %arg4[%c0_9, %c0_10, %c0_11], %11 {strides = array<i32>} : memref<1x8x128xf32, #tpu.memory_space<vmem>>, vector<1x8x128xf32>,
    return
  }
  func.func @transform_0(%arg0: i32) -> (i32, i32, i32) {
    %c0_i32 = arith.constant 0 : i32
    %c0_i32_0 = arith.constant 0 : i32
    %c0_i32_1 = arith.constant 0 : i32
    return %arg0, %c0_i32, %c0_i32_0 : i32, i32, i32
  }
  func.func @transform_1(%arg0: i32) -> (i32, i32, i32) {
    %c0_i32 = arith.constant 0 : i32
    %c0_i32_0 = arith.constant 0 : i32
    %c0_i32_1 = arith.constant 0 : i32
    return %arg0, %c0_i32, %c0_i32_0 : i32, i32, i32
  }
  func.func @transform_2(%arg0: i32) -> (i32, i32, i32) {
    %c0_i32 = arith.constant 0 : i32
    %c0_i32_0 = arith.constant 0 : i32
    %c0_i32_1 = arith.constant 0 : i32
    return %arg0, %c0_i32, %c0_i32_0 : i32, i32, i32
  }
  func.func @transform_3(%arg0: i32) -> (i32, i32, i32) {
    %c0_i32 = arith.constant 0 : i32
    %c0_i32_0 = arith.constant 0 : i32
    %c0_i32_1 = arith.constant 0 : i32
    return %arg0, %c0_i32, %c0_i32_0 : i32, i32, i32
  }
}

</mosaic_0001>

<llo_original>
// kernel: tpu_custom_call.1
$region0: #{tpu_custom_call.1}
  #allocation0 [shape = 'u32[]', space=smem, size = 0x4, offset = 0x4, fixed_abs, tag = 'smem constant byte address 0x4 - core index']
  #allocation1 [shape = 'u32[144,128]{1,0:T(1,128)}', space=vmem, size = 0x12000, scoped, tag = 'internal scratch']
  %s0 = inlined_call_operand.hbm [shape: f32[1,8,128], index: 0, kind: input, shape index: {}]
  %s1 = inlined_call_operand.hbm [shape: f32[1,8,128], index: 1, kind: input, shape index: {}]
  %s2 = inlined_call_operand.hbm [shape: f32[1,8,128], index: 2, kind: input, shape index: {}]
  %s3 = inlined_call_operand.hbm [shape: f32[1,8,128], index: 3, kind: output, shape index: {}]
  %s4 = sld [smem:[#allocation0]]
  $region34: #{tpu_custom_call.1} parent=0
    _
  %s6 = ssub.s32 1, %s4
  %s7 = scalar_select 0, %s6, %s4
  $region1: #{tpu_custom_call.1} parent=0
    #allocation2 [shape = 'u8[4096]{0}', space=vmem, size = 0x1000, scoped, tag = 'input window, operand 0, single buffered']
    #allocation3 [shape = 's32[1]{0}', space=sflag, size = 0x4, scoped, tag = 'scoped memory for tpu_custom_call.1']
    #allocation4 [shape = 's32[1]{0}', space=sflag, size = 0x4, scoped, tag = 'scoped memory for tpu_custom_call.1']
    #allocation5 [shape = 'u8[4096]{0}', space=vmem, size = 0x1000, scoped, tag = 'input window, operand 1, single buffered']
    #allocation6 [shape = 's32[1]{0}', space=sflag, size = 0x4, scoped, tag = 'scoped memory for tpu_custom_call.1']
    #allocation7 [shape = 'u8[4096]{0}', space=vmem, size = 0x1000, scoped, tag = 'input window, operand 2, single buffered']
    #allocation8 [shape = 'u8[4096]{0}', space=vmem, size = 0x1000, scoped, tag = 'output window, operand 0, single buffered']
    %8 = vsyncpa [#allocation3], 0
    %9 = vsyncpa [#allocation6], 0
    %10 = vsyncpa [#allocation4], 0
    // Predicated region
    $region2: #{tpu_custom_call.1} parent=1 // pred_check
      _
    $region3: #{tpu_custom_call.1} parent=1 // pred_check_branch
      %12 = sbr.rel (0) target = $region5
    $region4: #{tpu_custom_call.1} parent=1 // pred_region
      %s14 = ssub.s32 128, 128
      %15 = vsyncadd [#allocation3], %s14
      %s17 = sshll.u32 [#allocation2], 4
      %s18 = int_to_ptr.vmem [resolvable:$true] %s17
      %20 = dma.hbm_to_vmem [thread:$0]  %s0, 128, %s18, [#allocation3]
    $region5: #{tpu_custom_call.1} parent=1 // pred_fallthru
      _
    // Predicated region
    $region6: #{tpu_custom_call.1} parent=1 // pred_check
      _
    $region7: #{tpu_custom_call.1} parent=1 // pred_check_branch
      %22 = sbr.rel (0) target = $region9
    $region8: #{tpu_custom_call.1} parent=1 // pred_region
      %s24 = ssub.s32 128, 128
      %25 = vsyncadd [#allocation6], %s24
      %s27 = sshll.u32 [#allocation5], 4
      %s28 = int_to_ptr.vmem [resolvable:$true] %s27
      %30 = dma.hbm_to_vmem [thread:$0]  %s1, 128, %s28, [#allocation6]
    $region9: #{tpu_custom_call.1} parent=1 // pred_fallthru
      _
    // Predicated region
    $region10: #{tpu_custom_call.1} parent=1 // pred_check
      _
    $region11: #{tpu_custom_call.1} parent=1 // pred_check_branch
      %32 = sbr.rel (0) target = $region13
    $region12: #{tpu_custom_call.1} parent=1 // pred_region
      %s34 = ssub.s32 128, 128
      %35 = vsyncadd [#allocation6], %s34
      %s37 = sshll.u32 [#allocation7], 4
      %s38 = int_to_ptr.vmem [resolvable:$true] %s37
      %40 = dma.hbm_to_vmem [thread:$0]  %s2, 128, %s38, [#allocation6]
    $region13: #{tpu_custom_call.1} parent=1 // pred_fallthru
      _
    // Predicated region
    $region14: #{tpu_custom_call.1} parent=1 // pred_check
      _
    $region15: #{tpu_custom_call.1} parent=1 // pred_check_branch
      %42 = sbr.rel (0) target = $region17
    $region16: #{tpu_custom_call.1} parent=1 // pred_region
      %43 = dma.done [#allocation3], 128
    $region17: #{tpu_custom_call.1} parent=1 // pred_fallthru
      _
    // Predicated region
    $region18: #{tpu_custom_call.1} parent=1 // pred_check
      _
    $region19: #{tpu_custom_call.1} parent=1 // pred_check_branch
      %45 = sbr.rel (0) target = $region21
    $region20: #{tpu_custom_call.1} parent=1 // pred_region
      %46 = dma.done [#allocation6], 128
    $region21: #{tpu_custom_call.1} parent=1 // pred_fallthru
      _
    // Predicated region
    $region22: #{tpu_custom_call.1} parent=1 // pred_check
      _
    $region23: #{tpu_custom_call.1} parent=1 // pred_check_branch
      %48 = sbr.rel (0) target = $region25
    $region24: #{tpu_custom_call.1} parent=1 // pred_region
      %49 = dma.done [#allocation6], 128
    $region25: #{tpu_custom_call.1} parent=1 // pred_fallthru
      _
    %v50 = vld [vmem:[#allocation2] sm:$0xff]
    %v51 = vld [vmem:[#allocation5] sm:$0xff]
    %v52 = vld [vmem:[#allocation7] sm:$0xff]
    %v53 = vsub.f32 %v50, %v51
    %v54 = vsub.f32 0.0, %v52
    %v55 = vmul.f32 %v54, 1.442695
    %v56 = vpow.pop %v55
    %v57 = vmul.f32 %v53, %v53
    %v58 = vmul.f32 %v56, %v57
    %v59 = vadd.f32 %v58, %v52
    %v60 = vadd.f32 %v59, 0.0
    %61 = vst [vmem:[#allocation8] sm:$0xff] %v60
    // Predicated region
    $region26: #{tpu_custom_call.1} parent=1 // pred_check
      _
    $region27: #{tpu_custom_call.1} parent=1 // pred_check_branch
      %63 = sbr.rel (0) target = $region29
    $region28: #{tpu_custom_call.1} parent=1 // pred_region
      %s65 = ssub.s32 128, 128
      %66 = vsyncadd [#allocation4], %s65
      %s68 = sshll.u32 [#allocation8], 4
      %s69 = int_to_ptr.vmem [resolvable:$true] %s68
      %71 = dma.vmem_to_hbm [thread:$0]  %s69, 128, %s3, [#allocation4]
    $region29: #{tpu_custom_call.1} parent=1 // pred_fallthru
      _
    // Predicated region
    $region30: #{tpu_custom_call.1} parent=1 // pred_check
      _
    $region31: #{tpu_custom_call.1} parent=1 // pred_check_branch
      %73 = sbr.rel (0) target = $region33
    $region32: #{tpu_custom_call.1} parent=1 // pred_region
      %74 = dma.done [#allocation4], 128
    $region33: #{tpu_custom_call.1} parent=1 // pred_fallthru
      _
    %75 = vsyncpa [#allocation3], 1
    %76 = vsyncpa [#allocation6], 1
    %77 = vsyncpa [#allocation4], 1

</llo_original>
